<compile_context>
chip_gen: v5e
topology: v5e:2x2
jax: 0.10.0
libtpu: 0.0.40
codegen_flags: <defaults>
</compile_context>

<pallas_src>
import functools

import jax
import jax.numpy as jnp
from jax.experimental import pallas as pl
from jax.experimental.pallas import tpu as pltpu


# Scoped-VMEM cap.  Keep <= ~48 MiB on v7x (64 MiB physical per TensorCore); at the
# default tile=512 this kernel only needs a few MiB, so 32 MiB is ample everywhere.
_VMEM_LIMIT_BYTES = 32 * 1024 * 1024

# Keep the folded (Npad, Cpad) xw slab fully VMEM-resident when it is at most this big
# (counted once; Pallas may still double-buffer it, so stay well under the scoped cap).
_X_RESIDENT_BUDGET_BYTES = 4 * 1024 * 1024


def _round_up(v, m):
    return pl.cdiv(v, m) * m


def gcn_kernel(a_ref, xw_ref, b_ref, o_ref, acc_ref, *, x_resident):
    # a_ref  : (tm, tk)      bf16 tile of the normalized adjacency
    # xw_ref : (Npad, Cpad)  bf16 folded x @ W.T, whole slab   (x_resident=True), or
    #          (tk,   Cpad)  bf16 per-k tile                   (x_resident=False)
    # b_ref  : (1, Cpad)     f32 folded (batch-tiled) bias
    # o_ref  : (tm, Cpad)    bf16 lane-dense output tile
    # acc_ref: (tm, Cpad)    f32 accumulator
    k = pl.program_id(1)
    tk = a_ref.shape[1]

    @pl.when(k == 0)
    def _():
        acc_ref[...] = jnp.zeros_like(acc_ref)

    if x_resident:
        rhs = xw_ref[pl.ds(pl.multiple_of(k * tk, tk), tk), :]
    else:
        rhs = xw_ref[...]

    # Dominant matmul: (tm, tk) @ (tk, Cpad) on the MXU, f32 accumulation.
    acc_ref[...] += jnp.dot(a_ref[...], rhs, preferred_element_type=jnp.float32)

    @pl.when(k == pl.num_programs(1) - 1)
    def _():
        # Bias add in f32, single lane-dense bf16 store.
        o_ref[...] = (acc_ref[...] + b_ref[...]).astype(o_ref.dtype)


def self_looped_adj_mat(adj_mat):
    """Mirror of GCN_layer.self_looped_adj_mat (init-time, plain-JAX glue)."""
    n = adj_mat.shape[0]
    a_self = adj_mat + jnp.eye(n, dtype=adj_mat.dtype)
    d = jnp.sqrt(jnp.reciprocal(jnp.sum(a_self, axis=0)))   # degree >= 1 (self loop)
    return d[:, None] * a_self * d[None, :]                 # diag(d) @ A_self @ diag(d)


def gcn_layer_forward(x, a_norm, weight, bias, *, tile=512):
    """GCN_layer.forward:  x (B, N, Fin) -> (B, N, Fout).

    weight: (Fout, Fin), bias: (Fout,), a_norm: (N, N) pre-normalized adjacency.
    """
    B, N, Fin = x.shape
    Fout = weight.shape[0]
    C = B * Fout                       # folded batch*feature width
    Cpad = _round_up(C, 128)           # lane-dense folded width

    # Tile the node dimension (wrapper knob; 512 default, 128 fine for tiny graphs).
    # N is zero-padded to a tile multiple (never a full-extent fallback block).
    tile = max(128, _round_up(tile, 128))
    tm = tk = min(tile, _round_up(N, 128))
    Npad = _round_up(N, tm)
    grid = (Npad // tm, Npad // tk)

    # fc pre-applied once, in f32, by XLA:  (A @ x) @ W.T == A @ (x @ W.T).
    xw = jnp.einsum("bnf,of->bno", x.astype(jnp.float32), weight.astype(jnp.float32))
    # Fold batch into the matmul RHS: (B, N, Fout) -> (N, B*Fout), bf16 for the MXU.
    xw_folded = jnp.transpose(xw, (1, 0, 2)).reshape(N, C).astype(jnp.bfloat16)
    xw_pad = jnp.zeros((Npad, Cpad), jnp.bfloat16).at[:N, :C].set(xw_folded)

    a_pad = jnp.zeros((Npad, Npad), jnp.bfloat16).at[:N, :N].set(
        a_norm.astype(jnp.bfloat16))

    bias_folded = jnp.zeros((1, Cpad), jnp.float32).at[0, :C].set(
        jnp.tile(bias.astype(jnp.float32), B))

    # Keep the whole folded xw slab resident in VMEM (grid-invariant block -> no
    # per-step DMA) when small; otherwise stream a (tk, Cpad) tile per reduction step.
    x_resident = (Npad * Cpad * 2) <= _X_RESIDENT_BUDGET_BYTES
    if x_resident:
        xw_spec = pl.BlockSpec((Npad, Cpad), lambda m, k: (0, 0))
    else:
        xw_spec = pl.BlockSpec((tk, Cpad), lambda m, k: (k, 0))

    xw_reads = 1 if x_resident else grid[0]
    cost = pl.CostEstimate(
        flops=2 * Npad * Npad * Cpad,
        transcendentals=0,
        bytes_accessed=(Npad * Npad * 2                # A_norm, bf16, read once
                        + xw_reads * Npad * Cpad * 2   # folded xw, bf16
                        + Cpad * 4                     # bias, f32
                        + Npad * Cpad * 2))            # output, bf16

    out_pad = pl.pallas_call(
        functools.partial(gcn_kernel, x_resident=x_resident),
        out_shape=jax.ShapeDtypeStruct((Npad, Cpad), jnp.bfloat16),
        grid_spec=pltpu.PrefetchScalarGridSpec(
            num_scalar_prefetch=0,
            grid=grid,
            in_specs=[
                pl.BlockSpec((tm, tk), lambda m, k: (m, k)),    # A_norm tile
                xw_spec,                                        # folded x @ W.T
                pl.BlockSpec((1, Cpad), lambda m, k: (0, 0)),   # folded bias (shared)
            ],
            out_specs=pl.BlockSpec((tm, Cpad), lambda m, k: (m, 0)),
            scratch_shapes=[pltpu.VMEM((tm, Cpad), jnp.float32)],
        ),
        compiler_params=pltpu.CompilerParams(
            # Row axis parallel (both v7x TensorCores busy when Npad/tm >= 2),
            # reduction axis last + arbitrary (accumulator pattern).
            dimension_semantics=("parallel", "arbitrary"),
            vmem_limit_bytes=_VMEM_LIMIT_BYTES),
        cost_estimate=cost,
    )(a_pad, xw_pad, bias_folded)

    # Un-fold / un-pad:  (Npad, Cpad) -> (B, N, Fout).
    out = out_pad[:N, :C].reshape(N, B, Fout)
    out = jnp.transpose(out, (1, 0, 2))
    return out.astype(x.dtype)


if __name__ == "__main__":
    # Small, deterministic setup.  N is deliberately NOT a multiple of the tile so the
    # zero-padding path is exercised; tile=128 keeps the grid at (2, 2) at this size
    # (production-sized graphs should use the default tile=512).
    B, N = 2, 200          # batch, number of graph nodes
    Fin, Fout = 8, 32      # in_features, out_features

    key = jax.random.PRNGKey(0)
    k_adj, k_x, k_w, k_b = jax.random.split(key, 4)

    # Symmetric 0/1 adjacency (no self loops; the layer adds them).
    raw = jax.random.uniform(k_adj, (N, N))
    adj = (raw + raw.T > 1.0).astype(jnp.float32)
    adj = adj * (1.0 - jnp.eye(N, dtype=jnp.float32))

    a_norm = self_looped_adj_mat(adj)
    # TODO(synk): PyTorch stores A as sparse COO (torch.sparse.mm); at GCN densities a
    # dense bf16 MXU matmul is the faithful/efficient TPU equivalent, so no sparse kernel.

    x = jax.random.normal(k_x, (B, N, Fin), dtype=jnp.float32)

    # nn.Linear(in_features, out_features) parameters (PyTorch-default-style bounds).
    bound_w = 1.0 / jnp.sqrt(Fin * 1.0)
    weight = jax.random.uniform(k_w, (Fout, Fin), minval=-bound_w, maxval=bound_w,
                                dtype=jnp.float32)
    bias = jax.random.uniform(k_b, (Fout,), minval=-bound_w, maxval=bound_w,
                              dtype=jnp.float32)

    out = gcn_layer_forward(x, a_norm, weight, bias, tile=128)
    out = jax.block_until_ready(out)

    # Reference mirroring the kernel numerics: fc in f32, A-matmul with bf16 operands /
    # f32 accumulation, bf16 output store.
    xw_r = jnp.einsum("bnf,of->bno", x, weight)
    xw_r = xw_r.astype(jnp.bfloat16).astype(jnp.float32)
    a_r = a_norm.astype(jnp.bfloat16).astype(jnp.float32)
    ref = jnp.einsum("mn,bno->bmo", a_r, xw_r) + bias
    ref = ref.astype(jnp.bfloat16).astype(jnp.float32)

    assert out.shape == (B, N, Fout)
    assert jnp.allclose(out, ref, atol=5e-2, rtol=5e-2), "mismatch vs reference"

    print("KERNEL_OK")
</pallas_src>

<mosaic_0001>
module attributes {stable_mosaic.version = 11 : i64} {
  func.func @gcn_kernel(%arg0: i32, %arg1: i32, %arg2: memref<128x128xbf16, #tpu.memory_space<vmem>>, %arg3: memref<256x128xbf16, #tpu.memory_space<vmem>>, %arg4: memref<1x128xf32, #tpu.memory_space<vmem>>, %arg5: memref<128x128xbf16, #tpu.memory_space<vmem>>, %arg6: memref<128x128xf32, #tpu.memory_space<vmem>>) attributes {dimension_semantics = [#tpu.dimension_semantics<parallel>, #tpu.dimension_semantics<arbitrary>], iteration_bounds = array<i64: 2, 2>, scalar_prefetch = 0 : i64, scratch_operands = 1 : i64, tpu.core_type = #tpu.core_type<tc>, window_params = [{transform_indices = @transform_0, window_bounds = array<i64: 128, 128>}, {pipeline_mode = #tpu.pipeline_mode<synchronous>, transform_indices = @transform_1, window_bounds = array<i64: 256, 128>}, {pipeline_mode = #tpu.pipeline_mode<synchronous>, transform_indices = @transform_2, window_bounds = array<i64: 1, 128>}, {transform_indices = @transform_3, window_bounds = array<i64: 128, 128>}]} {
    %c0_i32 = arith.constant 0 : i32
    %0 = arith.cmpi eq, %arg1, %c0_i32 : i32
    %1 = arith.extui %0 : i1 to i32
    %c0_i32_0 = arith.constant 0 : i32
    %2 = arith.cmpi ne, %1, %c0_i32_0 : i32
    scf.if %2 {
      %cst_8 = arith.constant 0.000000e+00 : f32
      %15 = vector.broadcast %cst_8 : f32 to vector<128x128xf32>
      %c0_9 = arith.constant 0 : index
      %c0_10 = arith.constant 0 : index
      %16 = vector.load %arg6[%c0_9, %c0_10] : memref<128x128xf32, #tpu.memory_space<vmem>>, vector<128x128xf32>
      tpu.vector_store %arg6[%c0_9, %c0_10], %15 {strides = array<i32>} : memref<128x128xf32, #tpu.memory_space<vmem>>, vector<128x128xf32>,
    } else {
    }
    %c128_i32 = arith.constant 128 : i32
    %3 = arith.muli %arg1, %c128_i32 : i32
    %4 = tpu.assume_multiple %3, 128 : i32
    %5 = arith.index_cast %4 : i32 to index
    %c0 = arith.constant 0 : index
    %6 = vector.load %arg3[%5, %c0] : memref<256x128xbf16, #tpu.memory_space<vmem>>, vector<128x128xbf16>
    %c0_1 = arith.constant 0 : index
    %c0_2 = arith.constant 0 : index
    %7 = vector.load %arg6[%c0_1, %c0_2] : memref<128x128xf32, #tpu.memory_space<vmem>>, vector<128x128xf32>
    %c0_3 = arith.constant 0 : index
    %c0_4 = arith.constant 0 : index
    %8 = vector.load %arg2[%c0_3, %c0_4] : memref<128x128xbf16, #tpu.memory_space<vmem>>, vector<128x128xbf16>
    %cst = arith.constant dense<0.000000e+00> : vector<128x128xf32>
    %9 = tpu.matmul %8, %6, %cst {dimension_numbers = #tpu.dot_dimension_numbers<[1], [0], [0], [1], [0, 0, 1, 1], [], []>} : vector<128x128xbf16>, vector<128x128xbf16>, vector<128x128xf32> -> vector<128x128xf32>
    %10 = arith.addf %7, %9 : vector<128x128xf32>
    %c0_5 = arith.constant 0 : index
    %c0_6 = arith.constant 0 : index
    %11 = vector.load %arg6[%c0_5, %c0_6] : memref<128x128xf32, #tpu.memory_space<vmem>>, vector<128x128xf32>
    tpu.vector_store %arg6[%c0_5, %c0_6], %10 {strides = array<i32>} : memref<128x128xf32, #tpu.memory_space<vmem>>, vector<128x128xf32>,
    %c1_i32 = arith.constant 1 : i32
    %12 = arith.cmpi eq, %arg1, %c1_i32 : i32
    %13 = arith.extui %12 : i1 to i32
    %c0_i32_7 = arith.constant 0 : i32
    %14 = arith.cmpi ne, %13, %c0_i32_7 : i32
    scf.if %14 {
      %c0_8 = arith.constant 0 : index
      %c0_9 = arith.constant 0 : index
      %15 = vector.load %arg6[%c0_8, %c0_9] : memref<128x128xf32, #tpu.memory_space<vmem>>, vector<128x128xf32>
      %c0_10 = arith.constant 0 : index
      %c0_11 = arith.constant 0 : index
      %16 = vector.load %arg4[%c0_10, %c0_11] : memref<1x128xf32, #tpu.memory_space<vmem>>, vector<1x128xf32>
      %17 = vector.broadcast %16 : vector<1x128xf32> to vector<128x128xf32>
      %18 = arith.addf %15, %17 : vector<128x128xf32>
      %19 = arith.truncf %18 : vector<128x128xf32> to vector<128x128xbf16>
      %c0_12 = arith.constant 0 : index
      %c0_13 = arith.constant 0 : index
      %20 = vector.load %arg5[%c0_12, %c0_13] : memref<128x128xbf16, #tpu.memory_space<vmem>>, vector<128x128xbf16>
      tpu.vector_store %arg5[%c0_12, %c0_13], %19 {strides = array<i32>} : memref<128x128xbf16, #tpu.memory_space<vmem>>, vector<128x128xbf16>,
    } else {
    }
    return
  }
  func.func @transform_0(%arg0: i32, %arg1: i32) -> (i32, i32) {
    %c0_i32 = arith.constant 0 : i32
    return %arg0, %arg1 : i32, i32
  }
  func.func @transform_1(%arg0: i32, %arg1: i32) -> (i32, i32) {
    %c0_i32 = arith.constant 0 : i32
    %c0_i32_0 = arith.constant 0 : i32
    %c0_i32_1 = arith.constant 0 : i32
    return %c0_i32, %c0_i32_0 : i32, i32
  }
  func.func @transform_2(%arg0: i32, %arg1: i32) -> (i32, i32) {
    %c0_i32 = arith.constant 0 : i32
    %c0_i32_0 = arith.constant 0 : i32
    %c0_i32_1 = arith.constant 0 : i32
    return %c0_i32, %c0_i32_0 : i32, i32
  }
  func.func @transform_3(%arg0: i32, %arg1: i32) -> (i32, i32) {
    %c0_i32 = arith.constant 0 : i32
    %c0_i32_0 = arith.constant 0 : i32
    return %arg0, %c0_i32 : i32, i32
  }
}

</mosaic_0001>

<llo_original>
// kernel: tpu_custom_call.1
$region0: #{tpu_custom_call.1}
  #allocation0 [shape = 'u32[]', space=smem, size = 0x4, offset = 0x4, fixed_abs, tag = 'smem constant byte address 0x4 - core index']
  #allocation1 [shape = 'u32[72,128]{1,0:T(1,128)}', space=vmem, size = 0x9000, scoped, tag = 'internal scratch']
  #allocation2 [shape = 'f32[128,128]{1,0:T(8,128)}', space=vmem, size = 0x10000, scoped, tag = 'scratch operand']
  %s0 = inlined_call_operand.hbm [shape: bf16[256,256], index: 0, kind: input, shape index: {}]
  %s1 = inlined_call_operand.hbm [shape: bf16[256,128], index: 1, kind: input, shape index: {}]
  %s2 = inlined_call_operand.vmem [shape: f32[1,128], index: 2, kind: input, shape index: {}]
  %s3 = inlined_call_operand.hbm [shape: bf16[256,128], index: 3, kind: output, shape index: {}]
  %s4 = sld [smem:[#allocation0]]
  $region61: #{tpu_custom_call.1} parent=0
    _
  %s6 = ssub.s32 1, %s4
  %s7 = scalar_select 0, %s6, %s4
  $region1: #{tpu_custom_call.1} parent=0
    #allocation3 [shape = 'u8[65536]{0}', space=vmem, size = 0x10000, scoped, tag = 'input window, operand 0']
    #allocation4 [shape = 's32[2]{0}', space=sflag, size = 0x8, scoped, tag = 'scoped memory for tpu_custom_call.1']
    #allocation5 [shape = 's32[2]{0}', space=sflag, size = 0x8, scoped, tag = 'scoped memory for tpu_custom_call.1']
    #allocation6 [shape = 'u8[65536]{0}', space=vmem, size = 0x10000, scoped, tag = 'input window, operand 1, single buffered']
    #allocation7 [shape = 's32[1]{0}', space=sflag, size = 0x4, scoped, tag = 'scoped memory for tpu_custom_call.1']
    #allocation8 [shape = 'u8[65536]{0}', space=vmem, size = 0x10000, scoped, tag = 'output window, operand 0']
    %8 = vsyncpa [#allocation4], 0
    %s9 = scalar_lea.sflag [#allocation4], 1
    %10 = vsyncpa %s9, 0
    %11 = vsyncpa [#allocation7], 0
    %12 = vsyncpa [#allocation5], 0
    %s13 = scalar_lea.sflag [#allocation5], 1
    %14 = vsyncpa %s13, 0
    loop: start=0, step=1, limit=6
    $region2: #{tpu_custom_call.1} parent=1 // loop_pre_header
      _
    $region3: #{tpu_custom_call.1} parent=1 // loop_header
      %s16 = sphi 0, %s20
      %p17 = scmp.ge.s32.totalorder %s16, 6
      %s23 = sphi 0, %s35
      %s24 = sphi 0, %s31
      %s25 = sphi 0, %s23
      %s26 = sphi 0, %s24
      %s27 = sphi 0, %s25
      %s28 = sphi 0, %s26
      %s40 = sphi 0, %s42
      %s43 = sphi 0, %s40
      %s44 = sphi 0, %s43
      %s60 = sphi 0, %s44
      %s64 = sphi 0, %s64
      %s66 = sphi 0, %s64
      %s67 = sphi 0, %s66
      %s81 = sphi 0, %s67
      %s85 = sphi 0, %s85
      %s87 = sphi 0, %s85
      %s88 = sphi 0, %s87
      %s102 = sphi 0, %s88
      %s108 = sphi 0, %s110
      %s111 = sphi 0, %s108
      %s112 = sphi 0, %s111
      %s128 = sphi 0, %s112
    $region4: #{tpu_custom_call.1} parent=1 // loop_header_branch
      %19 = sbr.rel (%p17) target = $region8
    $region5: #{tpu_custom_call.1} parent=1 // loop_body
      %s21 = ssub.s32 %s16, 1
      %s22 = ssub.s32 %s16, 2
      %s29 = sadd.s32 1, %s24
      %p30 = scmp.ge.s32.totalorder %s29, 2
      %s31 = scalar_select %p30, 0, %s29
      %s32 = sadd.s32 1, %s23
      %s33 = scalar_select %p30, %s32, %s23
      %p34 = scmp.ge.s32.totalorder %s33, 2
      %s35 = scalar_select %p34, 0, %s33
      %s36 = ssub.s32 %s23, %s35
      %s37 = ssub.s32 %s24, %s31
      %s38 = sor.u32 %s36, %s37
      %p39 = scmp.eq.s32.totalorder %s38, 0
      %s41 = sadd.s32 %s40, 1
      %s42 = scalar_select %p39, %s40, %s41
      %p45 = pneg %p39
      %p46 = scmp.eq.s32.totalorder %s16, 3
      %p47 = por %p45, %p46
      %p48 = scmp.ne.s32.totalorder %s40, %s43
      %p49 = scmp.eq.s32.totalorder %s16, 0
      %p50 = por %p48, %p49
      %p51 = scmp.ne.s32.totalorder %s40, %s43
      %p52 = scmp.eq.s32.totalorder %s21, 3
      %p53 = por %p51, %p52
      %p54 = scmp.ne.s32.totalorder %s43, %s44
      %p55 = scmp.eq.s32.totalorder %s21, 0
      %p56 = por %p54, %p55
      %p57 = scmp.ne.s32.totalorder %s43, %s44
      %p58 = scmp.eq.s32.totalorder %s22, 3
      %p59 = por %p57, %p58
      %p61 = scmp.ne.s32.totalorder %s44, %s60
      %p62 = scmp.eq.s32.totalorder %s22, 0
      %p63 = por %p61, %p62
      %s65 = sadd.s32 %s64, 1
      %p68 = scmp.eq.s32.totalorder %s16, 3
      %p69 = scmp.ne.s32.totalorder %s64, %s66
      %p70 = scmp.eq.s32.totalorder %s16, 0
      %p71 = por %p69, %p70
      %p72 = scmp.ne.s32.totalorder %s64, %s66
      %p73 = scmp.eq.s32.totalorder %s21, 3
      %p74 = por %p72, %p73
      %p75 = scmp.ne.s32.totalorder %s66, %s67
      %p76 = scmp.eq.s32.totalorder %s21, 0
      %p77 = por %p75, %p76
      %p78 = scmp.ne.s32.totalorder %s66, %s67
      %p79 = scmp.eq.s32.totalorder %s22, 3
      %p80 = por %p78, %p79
      %p82 = scmp.ne.s32.totalorder %s67, %s81
      %p83 = scmp.eq.s32.totalorder %s22, 0
      %p84 = por %p82, %p83
      %s86 = sadd.s32 %s85, 1
      %p89 = scmp.eq.s32.totalorder %s16, 3
      %p90 = scmp.ne.s32.totalorder %s85, %s87
      %p91 = scmp.eq.s32.totalorder %s16, 0
      %p92 = por %p90, %p91
      %p93 = scmp.ne.s32.totalorder %s85, %s87
      %p94 = scmp.eq.s32.totalorder %s21, 3
      %p95 = por %p93, %p94
      %p96 = scmp.ne.s32.totalorder %s87, %s88
      %p97 = scmp.eq.s32.totalorder %s21, 0
      %p98 = por %p96, %p97
      %p99 = scmp.ne.s32.totalorder %s87, %s88
      %p100 = scmp.eq.s32.totalorder %s22, 3
      %p101 = por %p99, %p100
      %p103 = scmp.ne.s32.totalorder %s88, %s102
      %p104 = scmp.eq.s32.totalorder %s22, 0
      %p105 = por %p103, %p104
      %s106 = ssub.s32 %s23, %s35
      %p107 = scmp.eq.s32.totalorder %s106, 0
      %s109 = sadd.s32 %s108, 1
      %s110 = scalar_select %p107, %s108, %s109
      %p113 = pneg %p107
      %p114 = scmp.eq.s32.totalorder %s16, 3
      %p115 = por %p113, %p114
      %p116 = scmp.ne.s32.totalorder %s108, %s111
      %p117 = scmp.eq.s32.totalorder %s16, 0
      %p118 = por %p116, %p117
      %p119 = scmp.ne.s32.totalorder %s108, %s111
      %p120 = scmp.eq.s32.totalorder %s21, 3
      %p121 = por %p119, %p120
      %p122 = scmp.ne.s32.totalorder %s111, %s112
      %p123 = scmp.eq.s32.totalorder %s21, 0
      %p124 = por %p122, %p123
      %p125 = scmp.ne.s32.totalorder %s111, %s112
      %p126 = scmp.eq.s32.totalorder %s22, 3
      %p127 = por %p125, %p126
      %p129 = scmp.ne.s32.totalorder %s112, %s128
      %p130 = scmp.eq.s32.totalorder %s22, 0
      %p131 = por %p129, %p130
      %p132 = scmp.le.s32.totalorder 1, %s16
      %p133 = scmp.lt.s32.totalorder %s16, 5
      %p134 = pnand %p132, %p133
      %p135 = pneg %p134
      // Predicated region
      $region9: #{tpu_custom_call.1} parent=5 // pred_check
        _
      $region10: #{tpu_custom_call.1} parent=5 // pred_check_branch
        %137 = sbr.rel (%p134) target = $region12
      $region11: #{tpu_custom_call.1} parent=5 // pred_region
        %s138 = ssub.s32 %s16, 1
        // Predicated region
        $region13: #{tpu_custom_call.1} parent=11 // pred_check
          %p139 = pneg %p77
        $region14: #{tpu_custom_call.1} parent=11 // pred_check_branch
          %141 = sbr.rel (%p139) target = $region16
        $region15: #{tpu_custom_call.1} parent=11 // pred_region
          %143 = vsyncadd [#allocation7], 0
          %s144 = sshll.u32 %s1, 4
          %s145 = int_to_ptr.hbm [resolvable:$true] %s144
          %s146 = sshll.u32 [#allocation6], 4
          %s147 = int_to_ptr.vmem [resolvable:$true] %s146
          %152 = dma.hbm_to_vmem [thread:$0]  %s145, 2048, %s147, [#allocation7], 64, 64, 4
        $region16: #{tpu_custom_call.1} parent=11 // pred_fallthru
          _
        // Predicated region
        $region17: #{tpu_custom_call.1} parent=11 // pred_check
          %p153 = pneg %p98
        $region18: #{tpu_custom_call.1} parent=11 // pred_check_branch
          %155 = sbr.rel (%p153) target = $region20
        $region19: #{tpu_custom_call.1} parent=11 // pred_region
          _
        $region20: #{tpu_custom_call.1} parent=11 // pred_fallthru
          _
      $region12: #{tpu_custom_call.1} parent=5 // pred_fallthru
        _
      %p156 = scmp.lt.s32.totalorder %s16, 4
      // Predicated region
      $region21: #{tpu_custom_call.1} parent=5 // pred_check
        %p157 = pneg %p156
      $region22: #{tpu_custom_call.1} parent=5 // pred_check_branch
        %159 = sbr.rel (%p157) target = $region24
      $region23: #{tpu_custom_call.1} parent=5 // pred_region
        // Predicated region
        $region25: #{tpu_custom_call.1} parent=23 // pred_check
          %p160 = pneg %p50
        $region26: #{tpu_custom_call.1} parent=23 // pred_check_branch
          %162 = sbr.rel (%p160) target = $region28
        $region27: #{tpu_custom_call.1} parent=23 // pred_region
          %s163 = sand.u32 %s40, 1
          %s164 = scalar_lea.sflag [#allocation4], %s163
          %s165 = sand.u32 %s40, 1
          %s166 = smul.addr %s165, 64
          %s167 = scalar_lea.vmem [#allocation3], %s166
          %s168 = smul.u32 16, %s23
          %170 = vsyncadd %s164, 0
          %s171 = smul.addr %s168, 2
          %s172 = sadd.s32 %s24, %s171
          %s173 = smul.addr %s172, 4
          %s174 = scalar_lea.hbm %s0, %s173
          %s175 = sshll.u32 %s174, 4
          %s176 = int_to_ptr.hbm [resolvable:$true] %s175
          %s177 = sshll.u32 %s167, 4
          %s178 = int_to_ptr.vmem [resolvable:$true] %s177
          %183 = dma.hbm_to_vmem [thread:$0]  %s176, 1024, %s178, %s164, 128, 64, 4
        $region28: #{tpu_custom_call.1} parent=23 // pred_fallthru
          _
      $region24: #{tpu_custom_call.1} parent=5 // pred_fallthru
        _
      %p184 = scmp.le.s32.totalorder 1, %s16
      %p185 = scmp.lt.s32.totalorder %s16, 5
      %p186 = pnand %p184, %p185
      %p187 = pneg %p186
      // Predicated region
      $region29: #{tpu_custom_call.1} parent=5 // pred_check
        _
      $region30: #{tpu_custom_call.1} parent=5 // pred_check_branch
        %189 = sbr.rel (%p186) target = $region32
      $region31: #{tpu_custom_call.1} parent=5 // pred_region
        %s190 = ssub.s32 %s16, 1
        %s191 = sand.u32 %s43, 1
        %s192 = scalar_lea.sflag [#allocation4], %s191
        %s193 = sand.u32 %s43, 1
        %s194 = smul.addr %s193, 64
        %s195 = scalar_lea.vmem [#allocation3], %s194
        // Predicated region
        $region33: #{tpu_custom_call.1} parent=31 // pred_check
          %p196 = pneg %p56
        $region34: #{tpu_custom_call.1} parent=31 // pred_check_branch
          %198 = sbr.rel (%p196) target = $region36
        $region35: #{tpu_custom_call.1} parent=31 // pred_region
          %200 = dma.done %s192, 1024
        $region36: #{tpu_custom_call.1} parent=31 // pred_fallthru
          _
        // Predicated region
        $region37: #{tpu_custom_call.1} parent=31 // pred_check
          %p201 = pneg %p77
        $region38: #{tpu_custom_call.1} parent=31 // pred_check_branch
          %203 = sbr.rel (%p201) target = $region40
        $region39: #{tpu_custom_call.1} parent=31 // pred_region
          %205 = dma.done [#allocation7], 2048
        $region40: #{tpu_custom_call.1} parent=31 // pred_fallthru
          _
        %s206 = sand.u32 %s43, 1
        %s207 = scalar_lea.sflag [#allocation4], %s206
        %s208 = sand.u32 %s43, 1
        %s209 = smul.addr %s208, 64
        %s210 = scalar_lea.vmem [#allocation3], %s209
        %p211 = pneg %p56
        %p212 = pneg %p53
        %p213 = pneg %p77
        %p214 = pneg %p74
        %p215 = pneg %p98
        %p216 = pneg %p95
        %p217 = pneg %p124
        %p218 = pneg %p121
        %s219 = sand.u32 %s111, 1
        %s220 = scalar_lea.sflag [#allocation5], %s219
        %s221 = sand.u32 %s111, 1
        %s222 = smul.addr %s221, 64
        %s223 = scalar_lea.vmem [#allocation8], %s222
        %s224 = smul.u32 16, %s25
        %s225 = smul.u32 16, %s25
        %p226 = scmp.eq.s32.totalorder %s26, 0
        // Predicated region
        $region41: #{tpu_custom_call.1} parent=31 // pred_check
          %p227 = pneg %p226
        $region42: #{tpu_custom_call.1} parent=31 // pred_check_branch
          %229 = sbr.rel (%p227) target = $region44
        $region43: #{tpu_custom_call.1} parent=31 // pred_region
          %230 = vst [vmem:[#allocation2] sm:$0xff] 0.0
          %231 = vst [vmem:[#allocation2 + $0x8] sm:$0xff] 0.0
          %232 = vst [vmem:[#allocation2 + $0x10] sm:$0xff] 0.0
          %233 = vst [vmem:[#allocation2 + $0x18] sm:$0xff] 0.0
          %234 = vst [vmem:[#allocation2 + $0x20] sm:$0xff] 0.0
          %235 = vst [vmem:[#allocation2 + $0x28] sm:$0xff] 0.0
          %236 = vst [vmem:[#allocation2 + $0x30] sm:$0xff] 0.0
          %237 = vst [vmem:[#allocation2 + $0x38] sm:$0xff] 0.0
          %238 = vst [vmem:[#allocation2 + $0x40] sm:$0xff] 0.0
          %239 = vst [vmem:[#allocation2 + $0x48] sm:$0xff] 0.0
          %240 = vst [vmem:[#allocation2 + $0x50] sm:$0xff] 0.0
          %241 = vst [vmem:[#allocation2 + $0x58] sm:$0xff] 0.0
          %242 = vst [vmem:[#allocation2 + $0x60] sm:$0xff] 0.0
          %243 = vst [vmem:[#allocation2 + $0x68] sm:$0xff] 0.0
          %244 = vst [vmem:[#allocation2 + $0x70] sm:$0xff] 0.0
          %245 = vst [vmem:[#allocation2 + $0x78] sm:$0xff] 0.0
        $region44: #{tpu_custom_call.1} parent=31 // pred_fallthru
          _
        %s246 = smul.u32 %s26, 128
        %s247 = sshra.s32 %s246, 3
        %s248 = sand.u32 %s246, 7
        %s249 = smul.addr %s247, 4
        %s250 = scalar_lea.vmem [#allocation6], %s249
        %v251 = vld [vmem:[%s250] sm:$0xf]
        %v252 = vld [vmem:[%s250 + $0x4] sm:$0xf]
        %v253 = vld [vmem:[%s250 + $0x8] sm:$0xf]
        %v254 = vld [vmem:[%s250 + $0xc] sm:$0xf]
        %v255 = vld [vmem:[%s250 + $0x10] sm:$0xf]
        %v256 = vld [vmem:[%s250 + $0x14] sm:$0xf]
        %v257 = vld [vmem:[%s250 + $0x18] sm:$0xf]
        %v258 = vld [vmem:[%s250 + $0x1c] sm:$0xf]
        %v259 = vld [vmem:[%s250 + $0x20] sm:$0xf]
        %v260 = vld [vmem:[%s250 + $0x24] sm:$0xf]
        %v261 = vld [vmem:[%s250 + $0x28] sm:$0xf]
        %v262 = vld [vmem:[%s250 + $0x2c] sm:$0xf]
        %v263 = vld [vmem:[%s250 + $0x30] sm:$0xf]
        %v264 = vld [vmem:[%s250 + $0x34] sm:$0xf]
        %v265 = vld [vmem:[%s250 + $0x38] sm:$0xf]
        %v266 = vld [vmem:[%s250 + $0x3c] sm:$0xf]
        %v267 = vld [vmem:[#allocation2] sm:$0xff]
        %v268 = vld [vmem:[#allocation2 + $0x8] sm:$0xff]
        %v269 = vld [vmem:[#allocation2 + $0x10] sm:$0xff]
        %v270 = vld [vmem:[#allocation2 + $0x18] sm:$0xff]
        %v271 = vld [vmem:[#allocation2 + $0x20] sm:$0xff]
        %v272 = vld [vmem:[#allocation2 + $0x28] sm:$0xff]
        %v273 = vld [vmem:[#allocation2 + $0x30] sm:$0xff]
        %v274 = vld [vmem:[#allocation2 + $0x38] sm:$0xff]
        %v275 = vld [vmem:[#allocation2 + $0x40] sm:$0xff]
        %v276 = vld [vmem:[#allocation2 + $0x48] sm:$0xff]
        %v277 = vld [vmem:[#allocation2 + $0x50] sm:$0xff]
        %v278 = vld [vmem:[#allocation2 + $0x58] sm:$0xff]
        %v279 = vld [vmem:[#allocation2 + $0x60] sm:$0xff]
        %v280 = vld [vmem:[#allocation2 + $0x68] sm:$0xff]
        %v281 = vld [vmem:[#allocation2 + $0x70] sm:$0xff]
        %v282 = vld [vmem:[#allocation2 + $0x78] sm:$0xff]
        %v283 = vld [vmem:[%s195] sm:$0xf]
        %v284 = vld [vmem:[%s195 + $0x4] sm:$0xf]
        %v285 = vld [vmem:[%s195 + $0x8] sm:$0xf]
        %v286 = vld [vmem:[%s195 + $0xc] sm:$0xf]
        %v287 = vld [vmem:[%s195 + $0x10] sm:$0xf]
        %v288 = vld [vmem:[%s195 + $0x14] sm:$0xf]
        %v289 = vld [vmem:[%s195 + $0x18] sm:$0xf]
        %v290 = vld [vmem:[%s195 + $0x1c] sm:$0xf]
        %v291 = vld [vmem:[%s195 + $0x20] sm:$0xf]
        %v292 = vld [vmem:[%s195 + $0x24] sm:$0xf]
        %v293 = vld [vmem:[%s195 + $0x28] sm:$0xf]
        %v294 = vld [vmem:[%s195 + $0x2c] sm:$0xf]
        %v295 = vld [vmem:[%s195 + $0x30] sm:$0xf]
        %v296 = vld [vmem:[%s195 + $0x34] sm:$0xf]
        %v297 = vld [vmem:[%s195 + $0x38] sm:$0xf]
        %v298 = vld [vmem:[%s195 + $0x3c] sm:$0xf]
        %v315 = vunpack.c.l.b16 %v283
        %v316 = vunpack.c.l.b16 %v284
        %v317 = vunpack.c.l.b16 %v285
        %v318 = vunpack.c.l.b16 %v286
        %v319 = vunpack.c.l.b16 %v287
        %v320 = vunpack.c.l.b16 %v288
        %v321 = vunpack.c.l.b16 %v289
        %v322 = vunpack.c.l.b16 %v290
        %v323 = vunpack.c.l.b16 %v291
        %v324 = vunpack.c.l.b16 %v292
        %v325 = vunpack.c.l.b16 %v293
        %v326 = vunpack.c.l.b16 %v294
        %v327 = vunpack.c.l.b16 %v295
        %v328 = vunpack.c.l.b16 %v296
        %v329 = vunpack.c.l.b16 %v297
        %v330 = vunpack.c.l.b16 %v298
        %v331 = vpack.c.b16 %v316, %v315
        %v332 = vpack.c.b16 %v318, %v317
        %v333 = vpack.c.b16 %v320, %v319
        %v334 = vpack.c.b16 %v322, %v321
        %v335 = vpack.c.b16 %v324, %v323
        %v336 = vpack.c.b16 %v326, %v325
        %v337 = vpack.c.b16 %v328, %v327
        %v338 = vpack.c.b16 %v330, %v329
        %v363 = vunpack.c.l.b16 %v251
        %v364 = vunpack.c.l.b16 %v252
        %v365 = vunpack.c.l.b16 %v253
        %v366 = vunpack.c.l.b16 %v254
        %v367 = vunpack.c.l.b16 %v255
        %v368 = vunpack.c.l.b16 %v256
        %v369 = vunpack.c.l.b16 %v257
        %v370 = vunpack.c.l.b16 %v258
        %v371 = vunpack.c.l.b16 %v259
        %v372 = vunpack.c.l.b16 %v260
        %v373 = vunpack.c.l.b16 %v261
        %v374 = vunpack.c.l.b16 %v262
        %v375 = vunpack.c.l.b16 %v263
        %v376 = vunpack.c.l.b16 %v264
        %v377 = vunpack.c.l.b16 %v265
        %v378 = vunpack.c.l.b16 %v266
        %v379 = vpack.c.b16 %v364, %v363
        %v380 = vpack.c.b16 %v366, %v365
        %v381 = vpack.c.b16 %v368, %v367
        %v382 = vpack.c.b16 %v370, %v369
        %v383 = vpack.c.b16 %v372, %v371
        %v384 = vpack.c.b16 %v374, %v373
        %v385 = vpack.c.b16 %v376, %v375
        %v386 = vpack.c.b16 %v378, %v377
        %395 = vmatpush.bf16.msra.mxu0 %v386
        %396 = vmatpush.bf16.msra.mxu0 %v385
        %397 = vmatpush.bf16.msra.mxu0 %v384
        %398 = vmatpush.bf16.msra.mxu0 %v383
        %399 = vmatpush.bf16.msra.mxu0 %v382
        %400 = vmatpush.bf16.msra.mxu0 %v381
        %401 = vmatpush.bf16.msra.mxu0 %v380
        %402 = vmatpush.bf16.msra.mxu0 %v379
        %403 = vmatmul.bf16.gmra.mxu0 %v331
        %v404 = vpop.f32.mrf.mxu0
        %v405 = vadd.f32 0.0, %v404
        %v406 = vpop.f32.mrf.mxu0
        %v407 = vadd.f32 0.0, %v406
        %408 = vmatmul.bf16.gmra.mxu0 %v332
        %v409 = vpop.f32.mrf.mxu0
        %v410 = vadd.f32 0.0, %v409
        %v411 = vpop.f32.mrf.mxu0
        %v412 = vadd.f32 0.0, %v411
        %413 = vmatmul.bf16.gmra.mxu0 %v333
        %v414 = vpop.f32.mrf.mxu0
        %v415 = vadd.f32 0.0, %v414
        %v416 = vpop.f32.mrf.mxu0
        %v417 = vadd.f32 0.0, %v416
        %418 = vmatmul.bf16.gmra.mxu0 %v334
        %v419 = vpop.f32.mrf.mxu0
        %v420 = vadd.f32 0.0, %v419
        %v421 = vpop.f32.mrf.mxu0
        %v422 = vadd.f32 0.0, %v421
        %423 = vmatmul.bf16.gmra.mxu0 %v335
        %v424 = vpop.f32.mrf.mxu0
        %v425 = vadd.f32 0.0, %v424
        %v426 = vpop.f32.mrf.mxu0
        %v427 = vadd.f32 0.0, %v426
        %428 = vmatmul.bf16.gmra.mxu0 %v336
        %v429 = vpop.f32.mrf.mxu0
        %v430 = vadd.f32 0.0, %v429
        %v431 = vpop.f32.mrf.mxu0
        %v432 = vadd.f32 0.0, %v431
        %433 = vmatmul.bf16.gmra.mxu0 %v337
        %v434 = vpop.f32.mrf.mxu0
        %v435 = vadd.f32 0.0, %v434
        %v436 = vpop.f32.mrf.mxu0
        %v437 = vadd.f32 0.0, %v436
        %438 = vmatmul.bf16.gmra.mxu0 %v338
        %v439 = vpop.f32.mrf.mxu0
        %v440 = vadd.f32 0.0, %v439
        %v441 = vpop.f32.mrf.mxu0
        %v442 = vadd.f32 0.0, %v441
        %443 = vdwg.mxu0
        %v444 = vadd.f32 %v267, %v405
        %v445 = vadd.f32 %v268, %v407
        %v446 = vadd.f32 %v269, %v410
        %v447 = vadd.f32 %v270, %v412
        %v448 = vadd.f32 %v271, %v415
        %v449 = vadd.f32 %v272, %v417
        %v450 = vadd.f32 %v273, %v420
        %v451 = vadd.f32 %v274, %v422
        %v452 = vadd.f32 %v275, %v425
        %v453 = vadd.f32 %v276, %v427
        %v454 = vadd.f32 %v277, %v430
        %v455 = vadd.f32 %v278, %v432
        %v456 = vadd.f32 %v279, %v435
        %v457 = vadd.f32 %v280, %v437
        %v458 = vadd.f32 %v281, %v440
        %v459 = vadd.f32 %v282, %v442
        %460 = vst [vmem:[#allocation2] sm:$0xff] %v444
        %461 = vst [vmem:[#allocation2 + $0x8] sm:$0xff] %v445
        %462 = vst [vmem:[#allocation2 + $0x10] sm:$0xff] %v446
        %463 = vst [vmem:[#allocation2 + $0x18] sm:$0xff] %v447
        %464 = vst [vmem:[#allocation2 + $0x20] sm:$0xff] %v448
        %465 = vst [vmem:[#allocation2 + $0x28] sm:$0xff] %v449
        %466 = vst [vmem:[#allocation2 + $0x30] sm:$0xff] %v450
        %467 = vst [vmem:[#allocation2 + $0x38] sm:$0xff] %v451
        %468 = vst [vmem:[#allocation2 + $0x40] sm:$0xff] %v452
        %469 = vst [vmem:[#allocation2 + $0x48] sm:$0xff] %v453
        %470 = vst [vmem:[#allocation2 + $0x50] sm:$0xff] %v454
        %471 = vst [vmem:[#allocation2 + $0x58] sm:$0xff] %v455
        %472 = vst [vmem:[#allocation2 + $0x60] sm:$0xff] %v456
        %473 = vst [vmem:[#allocation2 + $0x68] sm:$0xff] %v457
        %474 = vst [vmem:[#allocation2 + $0x70] sm:$0xff] %v458
        %475 = vst [vmem:[#allocation2 + $0x78] sm:$0xff] %v459
        %p476 = scmp.eq.s32.totalorder %s26, 1
        // Predicated region
        $region45: #{tpu_custom_call.1} parent=31 // pred_check
          %p477 = pneg %p476
        $region46: #{tpu_custom_call.1} parent=31 // pred_check_branch
          %479 = sbr.rel (%p477) target = $region48
        $region47: #{tpu_custom_call.1} parent=31 // pred_region
          %v480 = vld [vmem:[#allocation2] sm:$0xff]
          %v481 = vld [vmem:[#allocation2 + $0x8] sm:$0xff]
          %v482 = vld [vmem:[#allocation2 + $0x10] sm:$0xff]
          %v483 = vld [vmem:[#allocation2 + $0x18] sm:$0xff]
          %v484 = vld [vmem:[#allocation2 + $0x20] sm:$0xff]
          %v485 = vld [vmem:[#allocation2 + $0x28] sm:$0xff]
          %v486 = vld [vmem:[#allocation2 + $0x30] sm:$0xff]
          %v487 = vld [vmem:[#allocation2 + $0x38] sm:$0xff]
          %v488 = vld [vmem:[#allocation2 + $0x40] sm:$0xff]
          %v489 = vld [vmem:[#allocation2 + $0x48] sm:$0xff]
          %v490 = vld [vmem:[#allocation2 + $0x50] sm:$0xff]
          %v491 = vld [vmem:[#allocation2 + $0x58] sm:$0xff]
          %v492 = vld [vmem:[#allocation2 + $0x60] sm:$0xff]
          %v493 = vld [vmem:[#allocation2 + $0x68] sm:$0xff]
          %v494 = vld [vmem:[#allocation2 + $0x70] sm:$0xff]
          %v495 = vld [vmem:[#allocation2 + $0x78] sm:$0xff]
          %v496 = vld [vmem:[%s2] sm:$0x1]
          %v498 = vperm.slane %v496, 0
          %v500 = vadd.f32 %v480, %v498
          %v501 = vadd.f32 %v481, %v498
          %v502 = vadd.f32 %v482, %v498
          %v503 = vadd.f32 %v483, %v498
          %v504 = vadd.f32 %v484, %v498
          %v505 = vadd.f32 %v485, %v498
          %v506 = vadd.f32 %v486, %v498
          %v507 = vadd.f32 %v487, %v498
          %v508 = vadd.f32 %v488, %v498
          %v509 = vadd.f32 %v489, %v498
          %v510 = vadd.f32 %v490, %v498
          %v511 = vadd.f32 %v491, %v498
          %v512 = vadd.f32 %v492, %v498
          %v513 = vadd.f32 %v493, %v498
          %v514 = vadd.f32 %v494, %v498
          %v515 = vadd.f32 %v495, %v498
          %v516 = vpack.c.bf16 %v500, %v500
          %v517 = vpack.c.bf16 %v501, %v501
          %v518 = vpack.c.bf16 %v502, %v502
          %v519 = vpack.c.bf16 %v503, %v503
          %v520 = vpack.c.bf16 %v504, %v504
          %v521 = vpack.c.bf16 %v505, %v505
          %v522 = vpack.c.bf16 %v506, %v506
          %v523 = vpack.c.bf16 %v507, %v507
          %v524 = vpack.c.bf16 %v508, %v508
          %v525 = vpack.c.bf16 %v509, %v509
          %v526 = vpack.c.bf16 %v510, %v510
          %v527 = vpack.c.bf16 %v511, %v511
          %v528 = vpack.c.bf16 %v512, %v512
          %v529 = vpack.c.bf16 %v513, %v513
          %v530 = vpack.c.bf16 %v514, %v514
          %v531 = vpack.c.bf16 %v515, %v515
          %532 = vst [vmem:[%s223] sm:$0xf] %v516
          %533 = vst [vmem:[%s223 + $0x4] sm:$0xf] %v517
          %534 = vst [vmem:[%s223 + $0x8] sm:$0xf] %v518
          %535 = vst [vmem:[%s223 + $0xc] sm:$0xf] %v519
          %536 = vst [vmem:[%s223 + $0x10] sm:$0xf] %v520
          %537 = vst [vmem:[%s223 + $0x14] sm:$0xf] %v521
          %538 = vst [vmem:[%s223 + $0x18] sm:$0xf] %v522
          %539 = vst [vmem:[%s223 + $0x1c] sm:$0xf] %v523
          %540 = vst [vmem:[%s223 + $0x20] sm:$0xf] %v524
          %541 = vst [vmem:[%s223 + $0x24] sm:$0xf] %v525
          %542 = vst [vmem:[%s223 + $0x28] sm:$0xf] %v526
          %543 = vst [vmem:[%s223 + $0x2c] sm:$0xf] %v527
          %544 = vst [vmem:[%s223 + $0x30] sm:$0xf] %v528
          %545 = vst [vmem:[%s223 + $0x34] sm:$0xf] %v529
          %546 = vst [vmem:[%s223 + $0x38] sm:$0xf] %v530
          %547 = vst [vmem:[%s223 + $0x3c] sm:$0xf] %v531
        $region48: #{tpu_custom_call.1} parent=31 // pred_fallthru
          _
        %s548 = sand.u32 %s111, 1
        %s549 = scalar_lea.sflag [#allocation5], %s548
        %s550 = sand.u32 %s111, 1
        %s551 = smul.addr %s550, 64
        %s552 = scalar_lea.vmem [#allocation8], %s551
        // Predicated region
        $region49: #{tpu_custom_call.1} parent=31 // pred_check
          %p553 = pneg %p121
        $region50: #{tpu_custom_call.1} parent=31 // pred_check_branch
          %555 = sbr.rel (%p553) target = $region52
        $region51: #{tpu_custom_call.1} parent=31 // pred_region
          %s556 = smul.u32 16, %s25
          %558 = vsyncadd %s549, 0
          %s559 = smul.addr %s556, 4
          %s560 = scalar_lea.hbm %s3, %s559
          %s561 = sshll.u32 %s552, 4
          %s562 = int_to_ptr.vmem [resolvable:$true] %s561
          %s563 = sshll.u32 %s560, 4
          %s564 = int_to_ptr.hbm [resolvable:$true] %s563
          %569 = dma.vmem_to_hbm [thread:$0]  %s562, 1024, %s564, %s549, 64, 64, 4
        $region52: #{tpu_custom_call.1} parent=31 // pred_fallthru
          _
      $region32: #{tpu_custom_call.1} parent=5 // pred_fallthru
        _
      %p570 = scmp.le.s32.totalorder 2, %s16
      // Predicated region
      $region53: #{tpu_custom_call.1} parent=5 // pred_check
        %p571 = pneg %p570
      $region54: #{tpu_custom_call.1} parent=5 // pred_check_branch
        %573 = sbr.rel (%p571) target = $region56
      $region55: #{tpu_custom_call.1} parent=5 // pred_region
        %s574 = ssub.s32 %s16, 2
        // Predicated region
        $region57: #{tpu_custom_call.1} parent=55 // pred_check
          %p575 = pneg %p127
        $region58: #{tpu_custom_call.1} parent=55 // pred_check_branch
          %577 = sbr.rel (%p575) target = $region60
        $region59: #{tpu_custom_call.1} parent=55 // pred_region
          %s578 = sand.u32 %s112, 1
          %s579 = scalar_lea.sflag [#allocation5], %s578
          %s580 = sand.u32 %s112, 1
          %s581 = smul.addr %s580, 64
          %s582 = scalar_lea.vmem [#allocation8], %s581
          %584 = dma.done %s579, 1024
        $region60: #{tpu_custom_call.1} parent=55 // pred_fallthru
          _
      $region56: #{tpu_custom_call.1} parent=5 // pred_fallthru
        _
    $region6: #{tpu_custom_call.1} parent=1 // loop_footer
      %s20 = sadd.s32 1, %s16
    $region7: #{tpu_custom_call.1} parent=1 // loop_footer_branch
      %15 = sbr.rel target = $region3
    $region8: #{tpu_custom_call.1} parent=1 // loop_exit
      _
    %585 = vsyncpa [#allocation4], 1
    %s586 = scalar_lea.sflag [#allocation4], 1
    %587 = vsyncpa %s586, 1
    %588 = vsyncpa [#allocation7], 1
    %589 = vsyncpa [#allocation5], 1
    %s590 = scalar_lea.sflag [#allocation5], 1
    %591 = vsyncpa %s590, 1

</llo_original>
